<compile_context>
chip_gen: v7x
topology: tpu7x:2x2x1
jax: 0.10.0
libtpu: 0.0.40
codegen_flags: <defaults>
</compile_context>

<pallas_src>
import jax
import jax.numpy as jnp
from jax import lax
from jax.experimental import pallas as pl
from jax.experimental.pallas import tpu as pltpu


def _logreg_kernel(x_ref, w_ref, b_ref, o_ref):
    # x: [TM, ft_in], w: [nb_classes, ft_in] (PyTorch layout), b: [1, nb_classes]
    x = x_ref[...]
    w = w_ref[...]
    b = b_ref[...]
    # Contract x dim 1 with w dim 1 -> [TM, nb_classes]; no transpose op needed.
    acc = lax.dot_general(
        x, w,
        dimension_numbers=(((1,), (1,)), ((), ())),
        preferred_element_type=jnp.float32,
    )
    o_ref[...] = (acc + b).astype(o_ref.dtype)


def logreg_forward(seq, weight, bias, *, block_rows=4096):
    """seq: [N, ft_in]; weight: [nb_classes, ft_in] (PyTorch layout); bias: [nb_classes]."""
    n, ft_in = seq.shape
    nb_classes = weight.shape[0]
    # Keep the bias-add in f32 (matches the f32 MXU accumulate; v5e-safe).
    b2 = bias.reshape(1, nb_classes).astype(jnp.float32)

    cost = pl.CostEstimate(
        flops=2 * n * ft_in * nb_classes,
        transcendentals=0,
        bytes_accessed=(seq.size * seq.dtype.itemsize
                        + weight.size * weight.dtype.itemsize
                        + b2.size * b2.dtype.itemsize
                        + n * nb_classes * seq.dtype.itemsize),
    )

    if n <= block_rows:
        # Small batch: single invocation, no grid / no pipeline machinery.
        # Everything is DMA'd whole into VMEM once (launch-overhead bound by
        # design); at n <= 4096 the padded x buffer is <= 2 MiB.
        return pl.pallas_call(
            _logreg_kernel,
            out_shape=jax.ShapeDtypeStruct((n, nb_classes), seq.dtype),
            in_specs=[
                pl.BlockSpec(memory_space=pltpu.MemorySpace.VMEM),
                pl.BlockSpec(memory_space=pltpu.MemorySpace.VMEM),
                pl.BlockSpec(memory_space=pltpu.MemorySpace.VMEM),
            ],
            out_specs=pl.BlockSpec(memory_space=pltpu.MemorySpace.VMEM),
            cost_estimate=cost,
        )(seq, weight, b2)

    # Large batch: stream rows of seq (the only axis that matters for this
    # memory-bound problem).  Weight/bias index_maps return (0, 0) so they stay
    # VMEM-resident across all grid steps.
    #
    # Choose the tile so the grid has at least 2 steps and an even count:
    # with only 1 (or an odd number of) step(s), the "parallel" axis cannot be
    # split evenly across v7x's two TensorCores and half the chip idles.
    steps = max(2, -(-n // block_rows))      # cdiv, >= 2
    if steps % 2:
        steps += 1
    tm = -(-n // steps)                      # cdiv
    tm = ((tm + 7) // 8) * 8                 # sublane-aligned tile
    grid = (pl.cdiv(n, tm),)

    return pl.pallas_call(
        _logreg_kernel,
        out_shape=jax.ShapeDtypeStruct((n, nb_classes), seq.dtype),
        grid=grid,
        in_specs=[
            # Default double-buffering is already enough here after the TM
            # increase; bump to pl.Buffered(3) only if profiling still shows
            # exposed input DMA (cheap in VMEM for this kernel).
            pl.BlockSpec((tm, ft_in), lambda i: (i, 0)),
            pl.BlockSpec((nb_classes, ft_in), lambda i: (0, 0)),
            pl.BlockSpec((1, nb_classes), lambda i: (0, 0)),
        ],
        out_specs=pl.BlockSpec((tm, nb_classes), lambda i: (i, 0)),
        compiler_params=pltpu.CompilerParams(
            dimension_semantics=("parallel",),   # megacore sharding on v7x
            vmem_limit_bytes=32 << 20,           # portable: <= v7x 64 MiB physical
        ),
        cost_estimate=cost,
    )(seq, weight, b2)


def xavier_uniform(key, shape, dtype=jnp.float32):
    # torch.nn.init.xavier_uniform_ on a Linear weight [out, in]:
    # bound = sqrt(6 / (fan_in + fan_out))
    fan_out, fan_in = shape
    bound = (6.0 / (fan_in + fan_out)) ** 0.5
    return jax.random.uniform(key, shape, dtype, minval=-bound, maxval=bound)


if __name__ == "__main__":
    key = jax.random.PRNGKey(0)
    k_x, k_w, k_big = jax.random.split(key, 3)

    N, FT_IN, NB_CLASSES = 8, 32, 8

    seq = jax.random.normal(k_x, (N, FT_IN), dtype=jnp.float32)
    weight = xavier_uniform(k_w, (NB_CLASSES, FT_IN))   # [nb_classes, ft_in]
    bias = jnp.zeros((NB_CLASSES,), dtype=jnp.float32)  # bias.data.fill_(0.0)

    # Small-batch path (no grid, VMEM-resident).
    out = logreg_forward(seq, weight, bias)
    jax.block_until_ready(out)
    ref = seq @ weight.T + bias
    assert out.shape == (N, NB_CLASSES)
    assert jnp.allclose(out, ref, atol=1e-5, rtol=1e-5)

    # Tiled-N path: exercise the grid (>= 2 even steps, partial last block)
    # at small shapes by overriding block_rows; the production default is 4096.
    N_BIG = 1000
    seq_big = jax.random.normal(k_big, (N_BIG, FT_IN), dtype=jnp.float32)
    out_big = logreg_forward(seq_big, weight, bias, block_rows=256)
    jax.block_until_ready(out_big)
    ref_big = seq_big @ weight.T + bias
    assert out_big.shape == (N_BIG, NB_CLASSES)
    assert jnp.allclose(out_big, ref_big, atol=1e-5, rtol=1e-5)

    print("KERNEL_OK")
</pallas_src>

<mosaic_0001>
module attributes {stable_mosaic.version = 11 : i64} {
  func.func @_logreg_kernel(%arg0: memref<8x32xf32, #tpu.memory_space<vmem>>, %arg1: memref<8x32xf32, #tpu.memory_space<vmem>>, %arg2: memref<1x8xf32, #tpu.memory_space<vmem>>, %arg3: memref<8x8xf32, #tpu.memory_space<vmem>>) attributes {dimension_semantics = [], scalar_prefetch = 0 : i64, scratch_operands = 0 : i64, tpu.core_type = #tpu.core_type<tc>} {
    %c0 = arith.constant 0 : index
    %c0_0 = arith.constant 0 : index
    %0 = vector.load %arg0[%c0, %c0_0] : memref<8x32xf32, #tpu.memory_space<vmem>>, vector<8x32xf32>
    %c0_1 = arith.constant 0 : index
    %c0_2 = arith.constant 0 : index
    %1 = vector.load %arg1[%c0_1, %c0_2] : memref<8x32xf32, #tpu.memory_space<vmem>>, vector<8x32xf32>
    %c0_3 = arith.constant 0 : index
    %c0_4 = arith.constant 0 : index
    %2 = vector.load %arg2[%c0_3, %c0_4] : memref<1x8xf32, #tpu.memory_space<vmem>>, vector<1x8xf32>
    %cst = arith.constant dense<0.000000e+00> : vector<8x8xf32>
    %3 = tpu.matmul %0, %1, %cst {dimension_numbers = #tpu.dot_dimension_numbers<[1], [1], [0], [0], [0, 0, 1, 0], [], []>} : vector<8x32xf32>, vector<8x32xf32>, vector<8x8xf32> -> vector<8x8xf32>
    %4 = vector.broadcast %2 : vector<1x8xf32> to vector<8x8xf32>
    %5 = arith.addf %3, %4 : vector<8x8xf32>
    %c0_5 = arith.constant 0 : index
    %c0_6 = arith.constant 0 : index
    %6 = vector.load %arg3[%c0_5, %c0_6] : memref<8x8xf32, #tpu.memory_space<vmem>>, vector<8x8xf32>
    tpu.vector_store %arg3[%c0_5, %c0_6], %5 {strides = array<i32>} : memref<8x8xf32, #tpu.memory_space<vmem>>, vector<8x8xf32>,
    return
  }
}

</mosaic_0001>

<llo_original>
// kernel: tpu_custom_call.1
$region0: #{tpu_custom_call.1}
  #allocation0 [shape = 'u32[]', space=smem, size = 0x4, offset = 0x4, fixed_abs, tag = 'smem constant byte address 0x4 - core index']
  #allocation1 [shape = 'u32[144,128]{1,0:T(1,128)}', space=vmem, size = 0x12000, scoped, tag = 'internal scratch']
  %s0 = inlined_call_operand.hbm [shape: f32[8,32], index: 0, kind: input, shape index: {}]
  %s1 = inlined_call_operand.hbm [shape: f32[8,32], index: 1, kind: input, shape index: {}]
  %s2 = inlined_call_operand.vmem [shape: f32[1,8], index: 2, kind: input, shape index: {}]
  %s3 = inlined_call_operand.hbm [shape: f32[8,8], index: 3, kind: output, shape index: {}]
  %s4 = sld [smem:[#allocation0]]
  $region30: #{tpu_custom_call.1} parent=0
    _
  %s6 = ssub.s32 1, %s4
  %s7 = scalar_select 0, %s6, %s4
  $region1: #{tpu_custom_call.1} parent=0
    #allocation2 [shape = 'u8[4096]{0}', space=vmem, size = 0x1000, scoped, tag = 'input window, operand 0, single buffered']
    #allocation3 [shape = 's32[1]{0}', space=sflag, size = 0x4, scoped, tag = 'scoped memory for tpu_custom_call.1']
    #allocation4 [shape = 's32[1]{0}', space=sflag, size = 0x4, scoped, tag = 'scoped memory for tpu_custom_call.1']
    #allocation5 [shape = 'u8[4096]{0}', space=vmem, size = 0x1000, scoped, tag = 'input window, operand 1, single buffered']
    #allocation6 [shape = 's32[1]{0}', space=sflag, size = 0x4, scoped, tag = 'scoped memory for tpu_custom_call.1']
    #allocation7 [shape = 'u8[4096]{0}', space=vmem, size = 0x1000, scoped, tag = 'output window, operand 0, single buffered']
    %8 = vsyncpa [#allocation3], 0
    %9 = vsyncpa [#allocation6], 0
    %10 = vsyncpa [#allocation4], 0
    // Predicated region
    $region2: #{tpu_custom_call.1} parent=1 // pred_check
      _
    $region3: #{tpu_custom_call.1} parent=1 // pred_check_branch
      %12 = sbr.rel (0) target = $region5
    $region4: #{tpu_custom_call.1} parent=1 // pred_region
      %s14 = ssub.s32 128, 128
      %15 = vsyncadd [#allocation3], %s14
      %s17 = sshll.u32 [#allocation2], 4
      %s18 = int_to_ptr.vmem [resolvable:$true] %s17
      %20 = dma.hbm_to_vmem [thread:$0]  %s0, 128, %s18, [#allocation3]
    $region5: #{tpu_custom_call.1} parent=1 // pred_fallthru
      _
    // Predicated region
    $region6: #{tpu_custom_call.1} parent=1 // pred_check
      _
    $region7: #{tpu_custom_call.1} parent=1 // pred_check_branch
      %22 = sbr.rel (0) target = $region9
    $region8: #{tpu_custom_call.1} parent=1 // pred_region
      %s24 = ssub.s32 128, 128
      %25 = vsyncadd [#allocation6], %s24
      %s27 = sshll.u32 [#allocation5], 4
      %s28 = int_to_ptr.vmem [resolvable:$true] %s27
      %30 = dma.hbm_to_vmem [thread:$0]  %s1, 128, %s28, [#allocation6]
    $region9: #{tpu_custom_call.1} parent=1 // pred_fallthru
      _
    // Predicated region
    $region10: #{tpu_custom_call.1} parent=1 // pred_check
      _
    $region11: #{tpu_custom_call.1} parent=1 // pred_check_branch
      %32 = sbr.rel (0) target = $region13
    $region12: #{tpu_custom_call.1} parent=1 // pred_region
      _
    $region13: #{tpu_custom_call.1} parent=1 // pred_fallthru
      _
    // Predicated region
    $region14: #{tpu_custom_call.1} parent=1 // pred_check
      _
    $region15: #{tpu_custom_call.1} parent=1 // pred_check_branch
      %34 = sbr.rel (0) target = $region17
    $region16: #{tpu_custom_call.1} parent=1 // pred_region
      %35 = dma.done [#allocation3], 128
    $region17: #{tpu_custom_call.1} parent=1 // pred_fallthru
      _
    // Predicated region
    $region18: #{tpu_custom_call.1} parent=1 // pred_check
      _
    $region19: #{tpu_custom_call.1} parent=1 // pred_check_branch
      %37 = sbr.rel (0) target = $region21
    $region20: #{tpu_custom_call.1} parent=1 // pred_region
      %38 = dma.done [#allocation6], 128
    $region21: #{tpu_custom_call.1} parent=1 // pred_fallthru
      _
    %v39 = vld [vmem:[#allocation2] sm:$0xff]
    %v40 = vld [vmem:[#allocation5] sm:$0xff]
    %v41 = vld [vmem:[%s2] sm:$0x1]
    %v43 = vlaneseq
    %v44 = vshrl.u32 %v43, 7
    %v45 = vsub.s32 0, %v44
    %v46 = vrot.slane %v41, %v45
    %vm48 = vcmask 261120
    %v50 = vsel %vm48, %v39, 0
    %v53 = vsel %vm48, %v40, 0
    %55 = vmatprep.subr.mxu0 0.0
    %56 = vmatpush1.xpose.msra.mxu0 %v53
    %57 = vmatprep.subr.mxu0 0.0
    %58 = vmatpush1.xpose.msra.mxu0 0.0
    %59 = vmatprep.subr.mxu0 0.0
    %60 = vmatpush1.xpose.msra.mxu0 0.0
    %61 = vmatprep.subr.mxu0 0.0
    %62 = vmatpush1.xpose.msra.mxu0 0.0
    %63 = vmatprep.subr.mxu0 0.0
    %64 = vmatpush1.xpose.msra.mxu0 0.0
    %65 = vmatprep.subr.mxu0 0.0
    %66 = vmatpush1.xpose.msra.mxu0 0.0
    %67 = vmatprep.subr.mxu0 0.0
    %68 = vmatpush1.xpose.msra.mxu0 0.0
    %69 = vmatprep.subr.mxu0 0.0
    %70 = vmatpush1.xpose.msra.mxu0 0.0
    %71 = vmatprep.subr.mxu0 0.0
    %72 = vmatpush1.xpose.msra.mxu0 0.0
    %73 = vmatprep.subr.mxu0 0.0
    %74 = vmatpush1.xpose.msra.mxu0 0.0
    %75 = vmatprep.subr.mxu0 0.0
    %76 = vmatpush1.xpose.msra.mxu0 0.0
    %77 = vmatprep.subr.mxu0 0.0
    %78 = vmatpush1.xpose.msra.mxu0 0.0
    %79 = vmatprep.subr.mxu0 0.0
    %80 = vmatpush1.xpose.msra.mxu0 0.0
    %81 = vmatprep.subr.mxu0 0.0
    %82 = vmatpush1.xpose.msra.mxu0 0.0
    %83 = vmatprep.subr.mxu0 0.0
    %84 = vmatpush1.xpose.msra.mxu0 0.0
    %85 = vmatprep.subr.mxu0 0.0
    %86 = vmatpush1.xpose.msra.mxu0 0.0
    %87 = vmatprep.subr.mxu0 0.0
    %88 = vmatpush1.xpose.msra.mxu0 0.0
    %89 = vmatprep.subr.mxu0 0.0
    %90 = vmatpush1.xpose.msra.mxu0 0.0
    %91 = vmatprep.subr.mxu0 0.0
    %92 = vmatpush1.xpose.msra.mxu0 0.0
    %93 = vmatprep.subr.mxu0 0.0
    %94 = vmatpush1.xpose.msra.mxu0 0.0
    %95 = vmatprep.subr.mxu0 0.0
    %96 = vmatpush1.xpose.msra.mxu0 0.0
    %97 = vmatprep.subr.mxu0 0.0
    %98 = vmatpush1.xpose.msra.mxu0 0.0
    %99 = vmatprep.subr.mxu0 0.0
    %100 = vmatpush1.xpose.msra.mxu0 0.0
    %101 = vmatprep.subr.mxu0 0.0
    %102 = vmatpush1.xpose.msra.mxu0 0.0
    %103 = vmatprep.subr.mxu0 0.0
    %104 = vmatpush1.xpose.msra.mxu0 0.0
    %105 = vmatprep.subr.mxu0 0.0
    %106 = vmatpush1.xpose.msra.mxu0 0.0
    %107 = vmatprep.subr.mxu0 0.0
    %108 = vmatpush1.xpose.msra.mxu0 0.0
    %109 = vmatprep.subr.mxu0 0.0
    %110 = vmatpush1.xpose.msra.mxu0 0.0
    %111 = vmatprep.subr.mxu0 0.0
    %112 = vmatpush1.xpose.msra.mxu0 0.0
    %113 = vmatprep.subr.mxu0 0.0
    %114 = vmatpush1.xpose.msra.mxu0 0.0
    %115 = vmatprep.subr.mxu0 0.0
    %116 = vmatpush1.xpose.msra.mxu0 0.0
    %117 = vmatprep.subr.mxu0 0.0
    %118 = vmatpush1.xpose.msra.mxu0 0.0
    %119 = vmatprep.mubr.f32.mxu0 0.0
    %120 = vmatmul.mubr.f32.gmra.mrb[0].mxu0 %v50
    %v121 = vpop.f32.mrb[0].mxu0
    %v122 = vadd.f32 %v46, %v121
    %v123 = vpop.f32.mrb[0].mxu0
    %124 = vdwg.mxu0
    %vm125 = vcmask 64512
    %126 = vst.msk [vmem:[#allocation7] sm:$0xff] %vm125, %v122
    // Predicated region
    $region22: #{tpu_custom_call.1} parent=1 // pred_check
      _
    $region23: #{tpu_custom_call.1} parent=1 // pred_check_branch
      %128 = sbr.rel (0) target = $region25
    $region24: #{tpu_custom_call.1} parent=1 // pred_region
      %s130 = ssub.s32 128, 128
      %131 = vsyncadd [#allocation4], %s130
      %s133 = sshll.u32 [#allocation7], 4
      %s134 = int_to_ptr.vmem [resolvable:$true] %s133
      %136 = dma.vmem_to_hbm [thread:$0]  %s134, 128, %s3, [#allocation4]
    $region25: #{tpu_custom_call.1} parent=1 // pred_fallthru
      _
    // Predicated region
    $region26: #{tpu_custom_call.1} parent=1 // pred_check
      _
    $region27: #{tpu_custom_call.1} parent=1 // pred_check_branch
      %138 = sbr.rel (0) target = $region29
    $region28: #{tpu_custom_call.1} parent=1 // pred_region
      %139 = dma.done [#allocation4], 128
    $region29: #{tpu_custom_call.1} parent=1 // pred_fallthru
      _
    %140 = vsyncpa [#allocation3], 1
    %141 = vsyncpa [#allocation6], 1
    %142 = vsyncpa [#allocation4], 1

</llo_original>
